<compile_context>
chip_gen: v7x
topology: tpu7x:2x2x1
jax: 0.10.0
libtpu: 0.0.40
codegen_flags: <defaults>
</compile_context>

<pallas_src>
import jax
import jax.numpy as jnp
import numpy as np
from jax import lax
from jax.experimental import pallas as pl
from jax.experimental.pallas import tpu as pltpu


def _leaky(x):
    return jnp.where(x >= 0, x, 0.01 * x)


# ----------------------------- Pallas kernels ------------------------------

def _stats_kernel(x_ref, w_ref, sum_ref, sq_ref):
    """Per-sample, per-GEMM-column sum / sum-of-squares of the transposed-conv output."""
    j = pl.program_id(1)

    @pl.when(j == 0)
    def _():
        sum_ref[...] = jnp.zeros_like(sum_ref)
        sq_ref[...] = jnp.zeros_like(sq_ref)

    x = _leaky(x_ref[0])                                                 # (TM, C_in)
    y = jnp.dot(x, w_ref[...], preferred_element_type=jnp.float32)      # (TM, Cpad)
    sum_ref[0] = sum_ref[0] + jnp.sum(y, axis=0, keepdims=True)
    sq_ref[0] = sq_ref[0] + jnp.sum(y * y, axis=0, keepdims=True)


def _gemm_norm_kernel(x_ref, w_ref, scale_ref, shift_ref, o_ref):
    """LeakyReLU -> ConvTranspose-as-GEMM -> folded InstanceNorm scale/shift -> LeakyReLU."""
    x = _leaky(x_ref[0])                                                 # (TM, C_in)
    # NOTE: for tiny C_in the MXU contraction dim is mostly idle; the op is HBM-bound
    # so this is fine.  For production C_in (>=64) the MXU path is the right unit.
    y = jnp.dot(x, w_ref[...], preferred_element_type=jnp.float32)      # (TM, Cpad)
    z = y * scale_ref[0] + shift_ref[0]                                  # (1, Cpad) bcast
    o_ref[0] = _leaky(z)


# ------------------------------ module wrapper ------------------------------

def factorized_increase(x, w1, w2, gamma, beta, *, kernel_size=2, stride=2,
                        padding=0, eps=1e-5, tile_rows=512):
    """x: [N, C_in, D, H, W]; w1/w2: [C_in, C_out//2, k, k, k] (torch ConvTranspose3d layout)."""
    # Supported configuration: kernel_size == stride, padding == 0 (the standard
    # "factorized increase" 2x upsample), so each transposed-conv output voxel receives
    # exactly one kernel tap and the conv is an exact GEMM.
    # TODO(synk): general (overlapping-tap) ConvTranspose3d configs not implemented.
    assert kernel_size == stride and padding == 0
    N, C_in, D, H, W = x.shape
    k = kernel_size
    C_out = 2 * w1.shape[1]
    Kvol = k * k * k
    CK = C_out * Kvol
    Cpad = ((CK + 127) // 128) * 128           # lane-dense GEMM / store width
    f32 = jnp.float32

    # ---- pack both branch weights into one GEMM weight [C_in, Cpad] ------------
    # (channel order = concat([conv_1, conv_2], dim=1), matching torch.cat)
    w_cat = jnp.concatenate([w1, w2], axis=1)                  # (C_in, C_out, k, k, k)
    w2d = w_cat.reshape(C_in, CK).astype(f32)
    if Cpad != CK:
        w2d = jnp.pad(w2d, ((0, 0), (0, Cpad - CK)))

    # ---- x: NCDHW -> per-sample channels-last rows ------------------------------
    # TODO(synk): accept NDHWC activations upstream to avoid this (small) extra HBM pass.
    Mn = D * H * W
    xr = jnp.transpose(x, (0, 2, 3, 4, 1)).reshape(N, Mn, C_in).astype(f32)

    TM = max(8, (min(tile_rows, Mn) // 8) * 8)                 # sublane-aligned row tile
    MT = -(-Mn // TM)                                          # cdiv
    Mn_pad = MT * TM
    if Mn_pad != Mn:
        # zero rows contribute 0 to sum/sum-of-squares and are sliced off at the end.
        xr = jnp.pad(xr, ((0, 0), (0, Mn_pad - Mn), (0, 0)))

    gemm_flops = 2 * N * Mn_pad * C_in * Cpad

    # ----------------------------- pass 1: statistics ----------------------------
    stats_sum, stats_sq = pl.pallas_call(
        _stats_kernel,
        out_shape=(jax.ShapeDtypeStruct((N, 1, Cpad), f32),
                   jax.ShapeDtypeStruct((N, 1, Cpad), f32)),
        grid=(N, MT),
        in_specs=[
            pl.BlockSpec((1, TM, C_in), lambda n, j: (n, j, 0)),
            pl.BlockSpec((C_in, Cpad), lambda n, j: (0, 0)),     # weight stays resident
        ],
        out_specs=(
            pl.BlockSpec((1, 1, Cpad), lambda n, j: (n, 0, 0)),  # accumulator per sample
            pl.BlockSpec((1, 1, Cpad), lambda n, j: (n, 0, 0)),
        ),
        compiler_params=pltpu.CompilerParams(
            dimension_semantics=("parallel", "arbitrary")),
        cost_estimate=pl.CostEstimate(
            flops=gemm_flops, transcendentals=0,
            bytes_accessed=int(xr.size * 4 + w2d.size * 4 + 2 * N * Cpad * 4)),
    )(xr, w2d)

    # ---- fold InstanceNorm (mean/rstd) + affine into per-GEMM-column scale/shift ----
    count = Mn * Kvol                                          # elements per (n, channel)
    ch_sum = stats_sum[:, 0, :CK].reshape(N, C_out, Kvol).sum(-1)
    ch_sq = stats_sq[:, 0, :CK].reshape(N, C_out, Kvol).sum(-1)
    mean = ch_sum / count
    var = jnp.maximum(ch_sq / count - mean * mean, 0.0)        # biased, like torch
    rstd = lax.rsqrt(var + eps)
    scale_c = gamma.astype(f32)[None, :] * rstd                # (N, C_out)
    shift_c = beta.astype(f32)[None, :] - mean * scale_c
    scale_col = jnp.repeat(scale_c, Kvol, axis=-1)             # (N, CK)
    shift_col = jnp.repeat(shift_c, Kvol, axis=-1)
    if Cpad != CK:
        pad_cols = ((0, 0), (0, Cpad - CK))
        scale_col = jnp.pad(scale_col, pad_cols)
        shift_col = jnp.pad(shift_col, pad_cols)
    scale_col = scale_col.reshape(N, 1, Cpad)
    shift_col = shift_col.reshape(N, 1, Cpad)

    # ------------------- pass 2: fused GEMM + InstanceNorm + LeakyReLU ------------
    y = pl.pallas_call(
        _gemm_norm_kernel,
        out_shape=jax.ShapeDtypeStruct((N, Mn_pad, Cpad), f32),
        grid=(N, MT),
        in_specs=[
            pl.BlockSpec((1, TM, C_in), lambda n, j: (n, j, 0)),
            pl.BlockSpec((C_in, Cpad), lambda n, j: (0, 0)),     # weight stays resident
            pl.BlockSpec((1, 1, Cpad), lambda n, j: (n, 0, 0)),
            pl.BlockSpec((1, 1, Cpad), lambda n, j: (n, 0, 0)),
        ],
        out_specs=pl.BlockSpec((1, TM, Cpad), lambda n, j: (n, j, 0)),  # lane-dense store
        compiler_params=pltpu.CompilerParams(
            dimension_semantics=("parallel", "parallel")),
        cost_estimate=pl.CostEstimate(
            flops=gemm_flops, transcendentals=0,
            bytes_accessed=int(xr.size * 4 + w2d.size * 4 + N * Mn_pad * Cpad * 4)),
    )(xr, w2d, scale_col, shift_col)

    # ---- scatter the k^3 taps into the upsampled NCDHW volume (single XLA copy) ----
    y = y[:, :Mn, :CK].reshape(N, D, H, W, C_out, k, k, k)
    y = jnp.transpose(y, (0, 4, 1, 5, 2, 6, 3, 7))             # N, C, D, kd, H, kh, W, kw
    return y.reshape(N, C_out, D * k, H * k, W * k)


# ------------------------- pure-JAX reference check -------------------------

def _reference(x, w1, w2, gamma, beta, k=2, p=0):
    xr = jnp.where(x >= 0, x, 0.01 * x)

    def conv_t(inp, w):
        # ConvTranspose3d == conv of stride-dilated input with flipped kernel,
        # padding = k - 1 - p on each side.
        wf = jnp.flip(w, axis=(2, 3, 4)).transpose(1, 0, 2, 3, 4)  # OIDHW
        return lax.conv_general_dilated(
            inp, wf, window_strides=(1, 1, 1),
            padding=[(k - 1 - p, k - 1 - p)] * 3,
            lhs_dilation=(k, k, k),
            dimension_numbers=("NCDHW", "OIDHW", "NCDHW"))

    out = jnp.concatenate([conv_t(xr, w1), conv_t(xr, w2)], axis=1)
    mean = out.mean(axis=(2, 3, 4), keepdims=True)
    var = ((out - mean) ** 2).mean(axis=(2, 3, 4), keepdims=True)
    out = (out - mean) / jnp.sqrt(var + 1e-5)
    out = out * gamma[None, :, None, None, None] + beta[None, :, None, None, None]
    return jnp.where(out >= 0, out, 0.01 * out)


# ---------------------------------- main ------------------------------------

if __name__ == "__main__":
    N, C_in, C_out = 2, 4, 8
    k, stride, pad = 2, 2, 0

    key = jax.random.PRNGKey(0)
    kx, kw1, kw2, kg, kb = jax.random.split(key, 5)

    # torch ConvTranspose3d weight layout: [C_in, C_out//2, kD, kH, kW], bias=False
    w1 = 0.2 * jax.random.normal(kw1, (C_in, C_out // 2, k, k, k), dtype=jnp.float32)
    w2 = 0.2 * jax.random.normal(kw2, (C_in, C_out // 2, k, k, k), dtype=jnp.float32)
    gamma = 1.0 + 0.1 * jax.random.normal(kg, (C_out,), dtype=jnp.float32)
    beta = 0.1 * jax.random.normal(kb, (C_out,), dtype=jnp.float32)

    # Case 1: standard small volume (single row-tile per sample).
    x = jax.random.normal(kx, (N, C_in, 4, 4, 4), dtype=jnp.float32)
    out = factorized_increase(x, w1, w2, gamma, beta,
                              kernel_size=k, stride=stride, padding=pad)
    out = jax.block_until_ready(out)
    ref = jax.block_until_ready(_reference(x, w1, w2, gamma, beta, k=k, p=pad))
    assert out.shape == (N, C_out, 8, 8, 8)
    np.testing.assert_allclose(np.asarray(out), np.asarray(ref), rtol=1e-4, atol=1e-4)

    # Case 2: force multiple row-tiles per sample + a ragged (padded) last tile,
    # exercising the cross-tile stats accumulation path.
    x2 = jax.random.normal(kx, (N, C_in, 3, 4, 5), dtype=jnp.float32)
    out2 = factorized_increase(x2, w1, w2, gamma, beta,
                               kernel_size=k, stride=stride, padding=pad,
                               tile_rows=16)
    out2 = jax.block_until_ready(out2)
    ref2 = jax.block_until_ready(_reference(x2, w1, w2, gamma, beta, k=k, p=pad))
    assert out2.shape == (N, C_out, 6, 8, 10)
    np.testing.assert_allclose(np.asarray(out2), np.asarray(ref2), rtol=1e-4, atol=1e-4)

    print("KERNEL_OK")
</pallas_src>

<mosaic_0001>
module attributes {stable_mosaic.version = 11 : i64} {
  func.func @_stats_kernel(%arg0: i32, %arg1: i32, %arg2: memref<1x64x4xf32, #tpu.memory_space<vmem>>, %arg3: memref<4x128xf32, #tpu.memory_space<vmem>>, %arg4: memref<1x1x128xf32, #tpu.memory_space<vmem>>, %arg5: memref<1x1x128xf32, #tpu.memory_space<vmem>>) attributes {dimension_semantics = [#tpu.dimension_semantics<parallel>, #tpu.dimension_semantics<arbitrary>], iteration_bounds = array<i64: 2, 1>, scalar_prefetch = 0 : i64, scratch_operands = 0 : i64, tpu.core_type = #tpu.core_type<tc>, window_params = [{transform_indices = @transform_0, window_bounds = array<i64: 1, 64, 4>}, {pipeline_mode = #tpu.pipeline_mode<synchronous>, transform_indices = @transform_1, window_bounds = array<i64: 4, 128>}, {transform_indices = @transform_2, window_bounds = array<i64: 1, 1, 128>}, {transform_indices = @transform_3, window_bounds = array<i64: 1, 1, 128>}]} {
    %c0_i32 = arith.constant 0 : i32
    %0 = arith.cmpi eq, %arg1, %c0_i32 : i32
    %1 = arith.extui %0 : i1 to i32
    %c0_i32_0 = arith.constant 0 : i32
    %2 = arith.cmpi ne, %1, %c0_i32_0 : i32
    scf.if %2 {
      %cst_21 = arith.constant 0.000000e+00 : f32
      %29 = vector.broadcast %cst_21 : f32 to vector<1x1x128xf32>
      %c0_22 = arith.constant 0 : index
      %c0_23 = arith.constant 0 : index
      %c0_24 = arith.constant 0 : index
      %30 = vector.load %arg4[%c0_22, %c0_23, %c0_24] : memref<1x1x128xf32, #tpu.memory_space<vmem>>, vector<1x1x128xf32>
      tpu.vector_store %arg4[%c0_22, %c0_23, %c0_24], %29 {strides = array<i32>} : memref<1x1x128xf32, #tpu.memory_space<vmem>>, vector<1x1x128xf32>,
      %cst_25 = arith.constant 0.000000e+00 : f32
      %31 = vector.broadcast %cst_25 : f32 to vector<1x1x128xf32>
      %c0_26 = arith.constant 0 : index
      %c0_27 = arith.constant 0 : index
      %c0_28 = arith.constant 0 : index
      %32 = vector.load %arg5[%c0_26, %c0_27, %c0_28] : memref<1x1x128xf32, #tpu.memory_space<vmem>>, vector<1x1x128xf32>
      tpu.vector_store %arg5[%c0_26, %c0_27, %c0_28], %31 {strides = array<i32>} : memref<1x1x128xf32, #tpu.memory_space<vmem>>, vector<1x1x128xf32>,
    } else {
    }
    %c0 = arith.constant 0 : index
    %c0_1 = arith.constant 0 : index
    %c0_2 = arith.constant 0 : index
    %3 = vector.load %arg2[%c0, %c0_1, %c0_2] : memref<1x64x4xf32, #tpu.memory_space<vmem>>, vector<1x64x4xf32>
    %4 = vector.shape_cast %3 : vector<1x64x4xf32> to vector<64x4xf32>
    %cst = arith.constant 0.000000e+00 : f32
    %5 = vector.broadcast %cst : f32 to vector<64x4xf32>
    %6 = arith.cmpf oge, %4, %5 : vector<64x4xf32>
    %cst_3 = arith.constant 0.00999999977 : f32
    %7 = vector.broadcast %cst_3 : f32 to vector<64x4xf32>
    %8 = arith.mulf %7, %4 : vector<64x4xf32>
    %9 = arith.select %6, %4, %8 : vector<64x4xi1>, vector<64x4xf32>
    %c0_4 = arith.constant 0 : index
    %c0_5 = arith.constant 0 : index
    %10 = vector.load %arg3[%c0_4, %c0_5] : memref<4x128xf32, #tpu.memory_space<vmem>>, vector<4x128xf32>
    %cst_6 = arith.constant dense<0.000000e+00> : vector<64x128xf32>
    %11 = tpu.matmul %9, %10, %cst_6 {dimension_numbers = #tpu.dot_dimension_numbers<[1], [0], [0], [1], [0, 0, 1, 1], [], []>} : vector<64x4xf32>, vector<4x128xf32>, vector<64x128xf32> -> vector<64x128xf32>
    %c0_7 = arith.constant 0 : index
    %c0_8 = arith.constant 0 : index
    %c0_9 = arith.constant 0 : index
    %12 = vector.load %arg4[%c0_7, %c0_8, %c0_9] : memref<1x1x128xf32, #tpu.memory_space<vmem>>, vector<1x1x128xf32>
    %13 = vector.shape_cast %12 : vector<1x1x128xf32> to vector<1x128xf32>
    %cst_10 = arith.constant dense<0.000000e+00> : vector<128xf32>
    %14 = vector.multi_reduction <add>, %11, %cst_10 [0] : vector<64x128xf32> to vector<128xf32>
    %15 = vector.shape_cast %14 : vector<128xf32> to vector<1x128xf32>
    %16 = arith.addf %13, %15 : vector<1x128xf32>
    %c0_11 = arith.constant 0 : index
    %c0_12 = arith.constant 0 : index
    %c0_13 = arith.constant 0 : index
    %17 = vector.load %arg4[%c0_11, %c0_12, %c0_13] : memref<1x1x128xf32, #tpu.memory_space<vmem>>, vector<1x1x128xf32>
    %18 = vector.shape_cast %17 : vector<1x1x128xf32> to vector<1x128xf32>
    %19 = vector.shape_cast %16 : vector<1x128xf32> to vector<1x1x128xf32>
    tpu.vector_store %arg4[%c0_11, %c0_12, %c0_13], %19 {strides = array<i32>} : memref<1x1x128xf32, #tpu.memory_space<vmem>>, vector<1x1x128xf32>,
    %c0_14 = arith.constant 0 : index
    %c0_15 = arith.constant 0 : index
    %c0_16 = arith.constant 0 : index
    %20 = vector.load %arg5[%c0_14, %c0_15, %c0_16] : memref<1x1x128xf32, #tpu.memory_space<vmem>>, vector<1x1x128xf32>
    %21 = vector.shape_cast %20 : vector<1x1x128xf32> to vector<1x128xf32>
    %22 = arith.mulf %11, %11 : vector<64x128xf32>
    %cst_17 = arith.constant dense<0.000000e+00> : vector<128xf32>
    %23 = vector.multi_reduction <add>, %22, %cst_17 [0] : vector<64x128xf32> to vector<128xf32>
    %24 = vector.shape_cast %23 : vector<128xf32> to vector<1x128xf32>
    %25 = arith.addf %21, %24 : vector<1x128xf32>
    %c0_18 = arith.constant 0 : index
    %c0_19 = arith.constant 0 : index
    %c0_20 = arith.constant 0 : index
    %26 = vector.load %arg5[%c0_18, %c0_19, %c0_20] : memref<1x1x128xf32, #tpu.memory_space<vmem>>, vector<1x1x128xf32>
    %27 = vector.shape_cast %26 : vector<1x1x128xf32> to vector<1x128xf32>
    %28 = vector.shape_cast %25 : vector<1x128xf32> to vector<1x1x128xf32>
    tpu.vector_store %arg5[%c0_18, %c0_19, %c0_20], %28 {strides = array<i32>} : memref<1x1x128xf32, #tpu.memory_space<vmem>>, vector<1x1x128xf32>,
    return
  }
  func.func @transform_0(%arg0: i32, %arg1: i32) -> (i32, i32, i32) {
    %c0_i32 = arith.constant 0 : i32
    %c0_i32_0 = arith.constant 0 : i32
    return %arg0, %arg1, %c0_i32 : i32, i32, i32
  }
  func.func @transform_1(%arg0: i32, %arg1: i32) -> (i32, i32) {
    %c0_i32 = arith.constant 0 : i32
    %c0_i32_0 = arith.constant 0 : i32
    %c0_i32_1 = arith.constant 0 : i32
    return %c0_i32, %c0_i32_0 : i32, i32
  }
  func.func @transform_2(%arg0: i32, %arg1: i32) -> (i32, i32, i32) {
    %c0_i32 = arith.constant 0 : i32
    %c0_i32_0 = arith.constant 0 : i32
    %c0_i32_1 = arith.constant 0 : i32
    return %arg0, %c0_i32, %c0_i32_0 : i32, i32, i32
  }
  func.func @transform_3(%arg0: i32, %arg1: i32) -> (i32, i32, i32) {
    %c0_i32 = arith.constant 0 : i32
    %c0_i32_0 = arith.constant 0 : i32
    %c0_i32_1 = arith.constant 0 : i32
    return %arg0, %c0_i32, %c0_i32_0 : i32, i32, i32
  }
}

</mosaic_0001>

<llo_original>
// kernel: tpu_custom_call.1
$region0: #{tpu_custom_call.1}
  #allocation0 [shape = 'u32[]', space=smem, size = 0x4, offset = 0x4, fixed_abs, tag = 'smem constant byte address 0x4 - core index']
  #allocation1 [shape = 'u32[144,128]{1,0:T(1,128)}', space=vmem, size = 0x12000, scoped, tag = 'internal scratch']
  %s0 = inlined_call_operand.vmem [shape: f32[2,64,4], index: 0, kind: input, shape index: {}]
  %s1 = inlined_call_operand.vmem [shape: f32[4,128], index: 1, kind: input, shape index: {}]
  %s2 = inlined_call_operand.hbm [shape: f32[2,1,128], index: 2, kind: output, shape index: {0}]
  %s3 = inlined_call_operand.hbm [shape: f32[2,1,128], index: 3, kind: output, shape index: {1}]
  %4 = xla_tuple %s2, %s3
  %s5 = sld [smem:[#allocation0]]
  $region53: #{tpu_custom_call.1} parent=0
    _
  %s7 = ssub.s32 1, %s5
  %s8 = scalar_select 0, %s7, %s5
  $region1: #{tpu_custom_call.1} parent=0
    #allocation2 [shape = 'u8[1024]{0}', space=vmem, size = 0x400, scoped, tag = 'output window, operand 0']
    #allocation3 [shape = 's32[2]{0}', space=sflag, size = 0x8, scoped, tag = 'scoped memory for tpu_custom_call.1']
    #allocation4 [shape = 'u8[1024]{0}', space=vmem, size = 0x400, scoped, tag = 'output window, operand 1']
    #allocation5 [shape = 's32[2]{0}', space=sflag, size = 0x8, scoped, tag = 'scoped memory for tpu_custom_call.1']
    %9 = vsyncpa [#allocation3], 0
    %s10 = scalar_lea.sflag [#allocation3], 1
    %11 = vsyncpa %s10, 0
    %12 = vsyncpa [#allocation5], 0
    %s13 = scalar_lea.sflag [#allocation5], 1
    %14 = vsyncpa %s13, 0
    loop: start=0, step=1, limit=4
    $region2: #{tpu_custom_call.1} parent=1 // loop_pre_header
      _
    $region3: #{tpu_custom_call.1} parent=1 // loop_header
      %s16 = sphi 0, %s20
      %p17 = scmp.ge.s32.totalorder %s16, 4
      %s23 = sphi 0, %s35
      %s24 = sphi 0, %s31
      %s25 = sphi 0, %s23
      %s26 = sphi 0, %s24
      %s27 = sphi 0, %s25
      %s28 = sphi 0, %s26
      %s40 = sphi 0, %s42
      %s43 = sphi 0, %s40
      %s44 = sphi 0, %s43
      %s60 = sphi 0, %s44
      %s64 = sphi 0, %s64
      %s66 = sphi 0, %s64
      %s67 = sphi 0, %s66
      %s81 = sphi 0, %s67
      %s87 = sphi 0, %s89
      %s90 = sphi 0, %s87
      %s91 = sphi 0, %s90
      %s107 = sphi 0, %s91
      %s113 = sphi 0, %s115
      %s116 = sphi 0, %s113
      %s117 = sphi 0, %s116
      %s133 = sphi 0, %s117
    $region4: #{tpu_custom_call.1} parent=1 // loop_header_branch
      %19 = sbr.rel (%p17) target = $region8
    $region5: #{tpu_custom_call.1} parent=1 // loop_body
      %s21 = ssub.s32 %s16, 1
      %s22 = ssub.s32 %s16, 2
      %s29 = sadd.s32 1, %s24
      %p30 = scmp.ge.s32.totalorder %s29, 1
      %s31 = scalar_select %p30, 0, %s29
      %s32 = sadd.s32 1, %s23
      %s33 = scalar_select %p30, %s32, %s23
      %p34 = scmp.ge.s32.totalorder %s33, 2
      %s35 = scalar_select %p34, 0, %s33
      %s36 = ssub.s32 %s23, %s35
      %s37 = ssub.s32 %s24, %s31
      %s38 = sor.u32 %s36, %s37
      %p39 = scmp.eq.s32.totalorder %s38, 0
      %s41 = sadd.s32 %s40, 1
      %s42 = scalar_select %p39, %s40, %s41
      %p45 = pneg %p39
      %p46 = scmp.eq.s32.totalorder %s16, 1
      %p47 = por %p45, %p46
      %p48 = scmp.ne.s32.totalorder %s40, %s43
      %p49 = scmp.eq.s32.totalorder %s16, 0
      %p50 = por %p48, %p49
      %p51 = scmp.ne.s32.totalorder %s40, %s43
      %p52 = scmp.eq.s32.totalorder %s21, 1
      %p53 = por %p51, %p52
      %p54 = scmp.ne.s32.totalorder %s43, %s44
      %p55 = scmp.eq.s32.totalorder %s21, 0
      %p56 = por %p54, %p55
      %p57 = scmp.ne.s32.totalorder %s43, %s44
      %p58 = scmp.eq.s32.totalorder %s22, 1
      %p59 = por %p57, %p58
      %p61 = scmp.ne.s32.totalorder %s44, %s60
      %p62 = scmp.eq.s32.totalorder %s22, 0
      %p63 = por %p61, %p62
      %s65 = sadd.s32 %s64, 1
      %p68 = scmp.eq.s32.totalorder %s16, 1
      %p69 = scmp.ne.s32.totalorder %s64, %s66
      %p70 = scmp.eq.s32.totalorder %s16, 0
      %p71 = por %p69, %p70
      %p72 = scmp.ne.s32.totalorder %s64, %s66
      %p73 = scmp.eq.s32.totalorder %s21, 1
      %p74 = por %p72, %p73
      %p75 = scmp.ne.s32.totalorder %s66, %s67
      %p76 = scmp.eq.s32.totalorder %s21, 0
      %p77 = por %p75, %p76
      %p78 = scmp.ne.s32.totalorder %s66, %s67
      %p79 = scmp.eq.s32.totalorder %s22, 1
      %p80 = por %p78, %p79
      %p82 = scmp.ne.s32.totalorder %s67, %s81
      %p83 = scmp.eq.s32.totalorder %s22, 0
      %p84 = por %p82, %p83
      %s85 = ssub.s32 %s23, %s35
      %p86 = scmp.eq.s32.totalorder %s85, 0
      %s88 = sadd.s32 %s87, 1
      %s89 = scalar_select %p86, %s87, %s88
      %p92 = pneg %p86
      %p93 = scmp.eq.s32.totalorder %s16, 1
      %p94 = por %p92, %p93
      %p95 = scmp.ne.s32.totalorder %s87, %s90
      %p96 = scmp.eq.s32.totalorder %s16, 0
      %p97 = por %p95, %p96
      %p98 = scmp.ne.s32.totalorder %s87, %s90
      %p99 = scmp.eq.s32.totalorder %s21, 1
      %p100 = por %p98, %p99
      %p101 = scmp.ne.s32.totalorder %s90, %s91
      %p102 = scmp.eq.s32.totalorder %s21, 0
      %p103 = por %p101, %p102
      %p104 = scmp.ne.s32.totalorder %s90, %s91
      %p105 = scmp.eq.s32.totalorder %s22, 1
      %p106 = por %p104, %p105
      %p108 = scmp.ne.s32.totalorder %s91, %s107
      %p109 = scmp.eq.s32.totalorder %s22, 0
      %p110 = por %p108, %p109
      %s111 = ssub.s32 %s23, %s35
      %p112 = scmp.eq.s32.totalorder %s111, 0
      %s114 = sadd.s32 %s113, 1
      %s115 = scalar_select %p112, %s113, %s114
      %p118 = pneg %p112
      %p119 = scmp.eq.s32.totalorder %s16, 1
      %p120 = por %p118, %p119
      %p121 = scmp.ne.s32.totalorder %s113, %s116
      %p122 = scmp.eq.s32.totalorder %s16, 0
      %p123 = por %p121, %p122
      %p124 = scmp.ne.s32.totalorder %s113, %s116
      %p125 = scmp.eq.s32.totalorder %s21, 1
      %p126 = por %p124, %p125
      %p127 = scmp.ne.s32.totalorder %s116, %s117
      %p128 = scmp.eq.s32.totalorder %s21, 0
      %p129 = por %p127, %p128
      %p130 = scmp.ne.s32.totalorder %s116, %s117
      %p131 = scmp.eq.s32.totalorder %s22, 1
      %p132 = por %p130, %p131
      %p134 = scmp.ne.s32.totalorder %s117, %s133
      %p135 = scmp.eq.s32.totalorder %s22, 0
      %p136 = por %p134, %p135
      %p137 = scmp.le.s32.totalorder 1, %s16
      %p138 = scmp.lt.s32.totalorder %s16, 3
      %p139 = pnand %p137, %p138
      %p140 = pneg %p139
      // Predicated region
      $region9: #{tpu_custom_call.1} parent=5 // pred_check
        _
      $region10: #{tpu_custom_call.1} parent=5 // pred_check_branch
        %142 = sbr.rel (%p139) target = $region12
      $region11: #{tpu_custom_call.1} parent=5 // pred_region
        %s143 = ssub.s32 %s16, 1
        // Predicated region
        $region13: #{tpu_custom_call.1} parent=11 // pred_check
          %p144 = pneg %p77
        $region14: #{tpu_custom_call.1} parent=11 // pred_check_branch
          %146 = sbr.rel (%p144) target = $region16
        $region15: #{tpu_custom_call.1} parent=11 // pred_region
          _
        $region16: #{tpu_custom_call.1} parent=11 // pred_fallthru
          _
      $region12: #{tpu_custom_call.1} parent=5 // pred_fallthru
        _
      %p147 = scmp.lt.s32.totalorder %s16, 2
      // Predicated region
      $region17: #{tpu_custom_call.1} parent=5 // pred_check
        %p148 = pneg %p147
      $region18: #{tpu_custom_call.1} parent=5 // pred_check_branch
        %150 = sbr.rel (%p148) target = $region20
      $region19: #{tpu_custom_call.1} parent=5 // pred_region
        // Predicated region
        $region21: #{tpu_custom_call.1} parent=19 // pred_check
          %p151 = pneg %p50
        $region22: #{tpu_custom_call.1} parent=19 // pred_check_branch
          %153 = sbr.rel (%p151) target = $region24
        $region23: #{tpu_custom_call.1} parent=19 // pred_region
          %s154 = smul.u32 8, %s24
          %p155 = scmp.lt.s32.totalorder %s23, 1
          %s156 = scalar_select %p155, %s23, 1
          %p157 = scmp.lt.s32.totalorder %s154, 7
          %s158 = scalar_select %p157, %s154, 7
          %s159 = smul.addr %s156, 8
          %s160 = sadd.s32 %s158, %s159
          %s161 = smul.addr %s160, 8
          %s162 = scalar_lea.vmem %s0, %s161
          %s163 = smul.u32 8, %s24
        $region24: #{tpu_custom_call.1} parent=19 // pred_fallthru
          _
      $region20: #{tpu_custom_call.1} parent=5 // pred_fallthru
        _
      %p164 = scmp.le.s32.totalorder 1, %s16
      %p165 = scmp.lt.s32.totalorder %s16, 3
      %p166 = pnand %p164, %p165
      %p167 = pneg %p166
      // Predicated region
      $region25: #{tpu_custom_call.1} parent=5 // pred_check
        _
      $region26: #{tpu_custom_call.1} parent=5 // pred_check_branch
        %169 = sbr.rel (%p166) target = $region28
      $region27: #{tpu_custom_call.1} parent=5 // pred_region
        %s170 = ssub.s32 %s16, 1
        %s171 = smul.u32 8, %s26
        %p172 = scmp.lt.s32.totalorder %s25, 1
        %s173 = scalar_select %p172, %s25, 1
        %p174 = scmp.lt.s32.totalorder %s171, 7
        %s175 = scalar_select %p174, %s171, 7
        %s176 = smul.addr %s173, 8
        %s177 = sadd.s32 %s175, %s176
        %s178 = smul.addr %s177, 8
        %s179 = scalar_lea.vmem %s0, %s178
        %p180 = pneg %p56
        %p181 = pneg %p53
        %p182 = pneg %p77
        %p183 = pneg %p74
        %p184 = pneg %p103
        %p185 = pneg %p100
        %s186 = sand.u32 %s90, 1
        %s187 = scalar_lea.sflag [#allocation3], %s186
        %s188 = sand.u32 %s90, 1
        %s189 = scalar_lea.vmem [#allocation2], %s188
        %p190 = pneg %p129
        %p191 = pneg %p126
        %s192 = sand.u32 %s116, 1
        %s193 = scalar_lea.sflag [#allocation5], %s192
        %s194 = sand.u32 %s116, 1
        %s195 = scalar_lea.vmem [#allocation4], %s194
        %s196 = smul.u32 8, %s26
        %p197 = scmp.lt.s32.totalorder %s25, 1
        %s198 = scalar_select %p197, %s25, 1
        %p199 = scmp.lt.s32.totalorder %s196, 7
        %s200 = scalar_select %p199, %s196, 7
        %s201 = smul.addr %s198, 8
        %s202 = sadd.s32 %s200, %s201
        %s203 = smul.addr %s202, 8
        %s204 = scalar_lea.vmem %s0, %s203
        %s205 = smul.u32 8, %s26
        %p206 = scmp.eq.s32.totalorder %s26, 0
        // Predicated region
        $region29: #{tpu_custom_call.1} parent=27 // pred_check
          %p207 = pneg %p206
        $region30: #{tpu_custom_call.1} parent=27 // pred_check_branch
          %209 = sbr.rel (%p207) target = $region32
        $region31: #{tpu_custom_call.1} parent=27 // pred_region
          %210 = vst [vmem:[%s189] sm:$0x1] 0.0
          %211 = vst [vmem:[%s195] sm:$0x1] 0.0
        $region32: #{tpu_custom_call.1} parent=27 // pred_fallthru
          _
        %v212 = vld [vmem:[%s204] sm:$0xff]
        %v213 = vld [vmem:[%s204 + $0x8] sm:$0xff]
        %v214 = vld [vmem:[%s204 + $0x10] sm:$0xff]
        %v215 = vld [vmem:[%s204 + $0x18] sm:$0xff]
        %v216 = vld [vmem:[%s204 + $0x20] sm:$0xff]
        %v217 = vld [vmem:[%s204 + $0x28] sm:$0xff]
        %v218 = vld [vmem:[%s204 + $0x30] sm:$0xff]
        %v219 = vld [vmem:[%s204 + $0x38] sm:$0xff]
        %vm220 = vcmp.ge.f32.partialorder %v212, 0.0
        %vm221 = vcmp.ge.f32.partialorder %v213, 0.0
        %vm222 = vcmp.ge.f32.partialorder %v214, 0.0
        %vm223 = vcmp.ge.f32.partialorder %v215, 0.0
        %vm224 = vcmp.ge.f32.partialorder %v216, 0.0
        %vm225 = vcmp.ge.f32.partialorder %v217, 0.0
        %vm226 = vcmp.ge.f32.partialorder %v218, 0.0
        %vm227 = vcmp.ge.f32.partialorder %v219, 0.0
        %v228 = vmul.f32 %v212, 0.01
        %v229 = vmul.f32 %v213, 0.01
        %v230 = vmul.f32 %v214, 0.01
        %v231 = vmul.f32 %v215, 0.01
        %v232 = vmul.f32 %v216, 0.01
        %v233 = vmul.f32 %v217, 0.01
        %v234 = vmul.f32 %v218, 0.01
        %v235 = vmul.f32 %v219, 0.01
        %v236 = vsel %vm220, %v212, %v228
        %v237 = vsel %vm221, %v213, %v229
        %v238 = vsel %vm222, %v214, %v230
        %v239 = vsel %vm223, %v215, %v231
        %v240 = vsel %vm224, %v216, %v232
        %v241 = vsel %vm225, %v217, %v233
        %v242 = vsel %vm226, %v218, %v234
        %v243 = vsel %vm227, %v219, %v235
        %v244 = vld [vmem:[%s1] sm:$0xf]
        %vm245 = vcmask 31744
        %v247 = vsel %vm245, %v236, 0
        %v250 = vsel %vm245, %v237, 0
        %v253 = vsel %vm245, %v238, 0
        %v256 = vsel %vm245, %v239, 0
        %v259 = vsel %vm245, %v240, 0
        %v262 = vsel %vm245, %v241, 0
        %v265 = vsel %vm245, %v242, 0
        %v268 = vsel %vm245, %v243, 0
        %vm270 = vcmask 1043456
        %v272 = vsel %vm270, %v244, 0
        %274 = vmatprep.subr.mxu0 0.0
        %275 = vmatpush1.msra.mxu0 %v272
        %276 = vmatprep.subr.mxu0 0.0
        %277 = vmatpush1.msra.mxu0 0.0
        %278 = vmatprep.subr.mxu0 0.0
        %279 = vmatpush1.msra.mxu0 0.0
        %280 = vmatprep.subr.mxu0 0.0
        %281 = vmatpush1.msra.mxu0 0.0
        %282 = vmatprep.subr.mxu0 0.0
        %283 = vmatpush1.msra.mxu0 0.0
        %284 = vmatprep.subr.mxu0 0.0
        %285 = vmatpush1.msra.mxu0 0.0
        %286 = vmatprep.subr.mxu0 0.0
        %287 = vmatpush1.msra.mxu0 0.0
        %288 = vmatprep.subr.mxu0 0.0
        %289 = vmatpush1.msra.mxu0 0.0
        %290 = vmatprep.subr.mxu0 0.0
        %291 = vmatpush1.msra.mxu0 0.0
        %292 = vmatprep.subr.mxu0 0.0
        %293 = vmatpush1.msra.mxu0 0.0
        %294 = vmatprep.subr.mxu0 0.0
        %295 = vmatpush1.msra.mxu0 0.0
        %296 = vmatprep.subr.mxu0 0.0
        %297 = vmatpush1.msra.mxu0 0.0
        %298 = vmatprep.subr.mxu0 0.0
        %299 = vmatpush1.msra.mxu0 0.0
        %300 = vmatprep.subr.mxu0 0.0
        %301 = vmatpush1.msra.mxu0 0.0
        %302 = vmatprep.subr.mxu0 0.0
        %303 = vmatpush1.msra.mxu0 0.0
        %304 = vmatprep.subr.mxu0 0.0
        %305 = vmatpush1.msra.mxu0 0.0
        %306 = vmatprep.subr.mxu0 0.0
        %307 = vmatpush1.msra.mxu0 0.0
        %308 = vmatprep.subr.mxu0 0.0
        %309 = vmatpush1.msra.mxu0 0.0
        %310 = vmatprep.subr.mxu0 0.0
        %311 = vmatpush1.msra.mxu0 0.0
        %312 = vmatprep.subr.mxu0 0.0
        %313 = vmatpush1.msra.mxu0 0.0
        %314 = vmatprep.subr.mxu0 0.0
        %315 = vmatpush1.msra.mxu0 0.0
        %316 = vmatprep.subr.mxu0 0.0
        %317 = vmatpush1.msra.mxu0 0.0
        %318 = vmatprep.subr.mxu0 0.0
        %319 = vmatpush1.msra.mxu0 0.0
        %320 = vmatprep.subr.mxu0 0.0
        %321 = vmatpush1.msra.mxu0 0.0
        %322 = vmatprep.subr.mxu0 0.0
        %323 = vmatpush1.msra.mxu0 0.0
        %324 = vmatprep.subr.mxu0 0.0
        %325 = vmatpush1.msra.mxu0 0.0
        %326 = vmatprep.subr.mxu0 0.0
        %327 = vmatpush1.msra.mxu0 0.0
        %328 = vmatprep.subr.mxu0 0.0
        %329 = vmatpush1.msra.mxu0 0.0
        %330 = vmatprep.subr.mxu0 0.0
        %331 = vmatpush1.msra.mxu0 0.0
        %332 = vmatprep.subr.mxu0 0.0
        %333 = vmatpush1.msra.mxu0 0.0
        %334 = vmatprep.subr.mxu0 0.0
        %335 = vmatpush1.msra.mxu0 0.0
        %336 = vmatprep.subr.mxu0 0.0
        %337 = vmatpush1.msra.mxu0 0.0
        %338 = vmatprep.mubr.f32.mxu0 0.0
        %339 = vmatmul.mubr.f32.gmra.mrb[0].mxu0 %v247
        %v340 = vpop.f32.mrb[0].mxu0
        %v341 = vadd.f32 0.0, %v340
        %v342 = vpop.f32.mrb[0].mxu0
        %343 = vmatprep.mubr.f32.mxu0 0.0
        %344 = vmatmul.mubr.f32.gmra.mrb[0].mxu0 %v250
        %v345 = vpop.f32.mrb[0].mxu0
        %v346 = vadd.f32 0.0, %v345
        %v347 = vpop.f32.mrb[0].mxu0
        %348 = vmatprep.mubr.f32.mxu0 0.0
        %349 = vmatmul.mubr.f32.gmra.mrb[0].mxu0 %v253
        %v350 = vpop.f32.mrb[0].mxu0
        %v351 = vadd.f32 0.0, %v350
        %v352 = vpop.f32.mrb[0].mxu0
        %353 = vmatprep.mubr.f32.mxu0 0.0
        %354 = vmatmul.mubr.f32.gmra.mrb[0].mxu0 %v256
        %v355 = vpop.f32.mrb[0].mxu0
        %v356 = vadd.f32 0.0, %v355
        %v357 = vpop.f32.mrb[0].mxu0
        %358 = vmatprep.mubr.f32.mxu0 0.0
        %359 = vmatmul.mubr.f32.gmra.mrb[0].mxu0 %v259
        %v360 = vpop.f32.mrb[0].mxu0
        %v361 = vadd.f32 0.0, %v360
        %v362 = vpop.f32.mrb[0].mxu0
        %363 = vmatprep.mubr.f32.mxu0 0.0
        %364 = vmatmul.mubr.f32.gmra.mrb[0].mxu0 %v262
        %v365 = vpop.f32.mrb[0].mxu0
        %v366 = vadd.f32 0.0, %v365
        %v367 = vpop.f32.mrb[0].mxu0
        %368 = vmatprep.mubr.f32.mxu0 0.0
        %369 = vmatmul.mubr.f32.gmra.mrb[0].mxu0 %v265
        %v370 = vpop.f32.mrb[0].mxu0
        %v371 = vadd.f32 0.0, %v370
        %v372 = vpop.f32.mrb[0].mxu0
        %373 = vmatprep.mubr.f32.mxu0 0.0
        %374 = vmatmul.mubr.f32.gmra.mrb[0].mxu0 %v268
        %v375 = vpop.f32.mrb[0].mxu0
        %v376 = vadd.f32 0.0, %v375
        %v377 = vpop.f32.mrb[0].mxu0
        %378 = vdwg.mxu0
        %v379 = vld [vmem:[%s189] sm:$0x1]
        %v380 = vadd.f32 %v341, %v346
        %v381 = vadd.f32 %v380, %v351
        %v382 = vadd.f32 %v381, %v356
        %v383 = vadd.f32 %v382, %v361
        %v384 = vadd.f32 %v383, %v366
        %v385 = vadd.f32 %v384, %v371
        %v386 = vadd.f32 %v385, %v376
        %v387 = vrot.slane %v386, 4
        %v388 = vadd.f32 %v386, %v387
        %v389 = vrot.slane %v388, 2
        %v390 = vadd.f32 %v388, %v389
        %v391 = vrot.slane %v390, 1
        %v392 = vadd.f32 %v390, %v391
        %v393 = vadd.f32 %v379, %v392
        %394 = vst [vmem:[%s189] sm:$0x1] %v393
        %v395 = vld [vmem:[%s195] sm:$0x1]
        %v396 = vmul.f32 %v341, %v341
        %v397 = vmul.f32 %v346, %v346
        %v398 = vmul.f32 %v351, %v351
        %v399 = vmul.f32 %v356, %v356
        %v400 = vmul.f32 %v361, %v361
        %v401 = vmul.f32 %v366, %v366
        %v402 = vmul.f32 %v371, %v371
        %v403 = vmul.f32 %v376, %v376
        %v404 = vadd.f32 %v396, %v397
        %v405 = vadd.f32 %v404, %v398
        %v406 = vadd.f32 %v405, %v399
        %v407 = vadd.f32 %v406, %v400
        %v408 = vadd.f32 %v407, %v401
        %v409 = vadd.f32 %v408, %v402
        %v410 = vadd.f32 %v409, %v403
        %v411 = vrot.slane %v410, 4
        %v412 = vadd.f32 %v410, %v411
        %v413 = vrot.slane %v412, 2
        %v414 = vadd.f32 %v412, %v413
        %v415 = vrot.slane %v414, 1
        %v416 = vadd.f32 %v414, %v415
        %v417 = vadd.f32 %v395, %v416
        %418 = vst [vmem:[%s195] sm:$0x1] %v417
        %s419 = sand.u32 %s90, 1
        %s420 = scalar_lea.sflag [#allocation3], %s419
        %s421 = sand.u32 %s90, 1
        %s422 = scalar_lea.vmem [#allocation2], %s421
        %s423 = sand.u32 %s116, 1
        %s424 = scalar_lea.sflag [#allocation5], %s423
        %s425 = sand.u32 %s116, 1
        %s426 = scalar_lea.vmem [#allocation4], %s425
        // Predicated region
        $region33: #{tpu_custom_call.1} parent=27 // pred_check
          %p427 = pneg %p100
        $region34: #{tpu_custom_call.1} parent=27 // pred_check_branch
          %429 = sbr.rel (%p427) target = $region36
        $region35: #{tpu_custom_call.1} parent=27 // pred_region
          %s431 = ssub.s32 16, 16
          %432 = vsyncadd %s420, %s431
          %s433 = smul.addr %s25, 16
          %s434 = scalar_lea.hbm %s2, %s433
          %s436 = sshll.u32 %s422, 4
          %s437 = int_to_ptr.vmem [resolvable:$true] %s436
          %439 = dma.vmem_to_hbm [thread:$0]  %s437, 16, %s434, %s420
        $region36: #{tpu_custom_call.1} parent=27 // pred_fallthru
          _
        // Predicated region
        $region37: #{tpu_custom_call.1} parent=27 // pred_check
          %p440 = pneg %p126
        $region38: #{tpu_custom_call.1} parent=27 // pred_check_branch
          %442 = sbr.rel (%p440) target = $region40
        $region39: #{tpu_custom_call.1} parent=27 // pred_region
          %s444 = ssub.s32 16, 16
          %445 = vsyncadd %s424, %s444
          %s446 = smul.addr %s25, 16
          %s447 = scalar_lea.hbm %s3, %s446
          %s449 = sshll.u32 %s426, 4
          %s450 = int_to_ptr.vmem [resolvable:$true] %s449
          %452 = dma.vmem_to_hbm [thread:$0]  %s450, 16, %s447, %s424
        $region40: #{tpu_custom_call.1} parent=27 // pred_fallthru
          _
      $region28: #{tpu_custom_call.1} parent=5 // pred_fallthru
        _
      %p453 = scmp.le.s32.totalorder 2, %s16
      // Predicated region
      $region41: #{tpu_custom_call.1} parent=5 // pred_check
        %p454 = pneg %p453
      $region42: #{tpu_custom_call.1} parent=5 // pred_check_branch
        %456 = sbr.rel (%p454) target = $region44
      $region43: #{tpu_custom_call.1} parent=5 // pred_region
        %s457 = ssub.s32 %s16, 2
        // Predicated region
        $region45: #{tpu_custom_call.1} parent=43 // pred_check
          %p458 = pneg %p106
        $region46: #{tpu_custom_call.1} parent=43 // pred_check_branch
          %460 = sbr.rel (%p458) target = $region48
        $region47: #{tpu_custom_call.1} parent=43 // pred_region
          %s461 = sand.u32 %s91, 1
          %s462 = scalar_lea.sflag [#allocation3], %s461
          %s463 = sand.u32 %s91, 1
          %s464 = scalar_lea.vmem [#allocation2], %s463
          %465 = dma.done %s462, 16
        $region48: #{tpu_custom_call.1} parent=43 // pred_fallthru
          _
        // Predicated region
        $region49: #{tpu_custom_call.1} parent=43 // pred_check
          %p466 = pneg %p132
        $region50: #{tpu_custom_call.1} parent=43 // pred_check_branch
          %468 = sbr.rel (%p466) target = $region52
        $region51: #{tpu_custom_call.1} parent=43 // pred_region
          %s469 = sand.u32 %s117, 1
          %s470 = scalar_lea.sflag [#allocation5], %s469
          %s471 = sand.u32 %s117, 1
          %s472 = scalar_lea.vmem [#allocation4], %s471
          %473 = dma.done %s470, 16
        $region52: #{tpu_custom_call.1} parent=43 // pred_fallthru
          _
      $region44: #{tpu_custom_call.1} parent=5 // pred_fallthru
        _
    $region6: #{tpu_custom_call.1} parent=1 // loop_footer
      %s20 = sadd.s32 1, %s16
    $region7: #{tpu_custom_call.1} parent=1 // loop_footer_branch
      %15 = sbr.rel target = $region3
    $region8: #{tpu_custom_call.1} parent=1 // loop_exit
      _
    %474 = vsyncpa [#allocation3], 1
    %s475 = scalar_lea.sflag [#allocation3], 1
    %476 = vsyncpa %s475, 1
    %477 = vsyncpa [#allocation5], 1
    %s478 = scalar_lea.sflag [#allocation5], 1
    %479 = vsyncpa %s478, 1

</llo_original>
